<compile_context>
chip_gen: v6e
topology: v6e:2x2x1
jax: 0.10.0
libtpu: 0.0.40
codegen_flags: <defaults>
</compile_context>

<pallas_src>
import jax
import jax.numpy as jnp
from jax.experimental import pallas as pl
from jax.experimental.pallas import tpu as pltpu

SUBLANE = 8
DEFAULT_BATCH_TILE = 512   # multiple of 256 (v6e/v7x MXU rows) and 128 (v5e)


def environment_condition_kernel(x_ref, w1_ref, b1_ref, w2_ref, b2_ref, out_ref):
    """One batch tile of: Linear -> ELU -> Linear.

    Shapes:
      x_ref:   (TB, D)       f32
      w1_ref:  (D, OUT)      f32 or bf16 (MXU operand dtype)
      b1_ref:  (1, OUT)      f32
      w2_ref:  (OUT, OUT)    f32 or bf16
      b2_ref:  (1, OUT)      f32
      out_ref: (TB, OUT)     f32
    Dots accumulate in f32; ELU and bias adds run in f32 on the VPU/EUP.
    """
    w1 = w1_ref[...]
    w2 = w2_ref[...]

    h = jnp.dot(x_ref[...].astype(w1.dtype), w1,
                preferred_element_type=jnp.float32) + b1_ref[...]

    # ELU (alpha=1): h if h > 0 else exp(h) - 1.
    # exp goes to the EUP (separate bundle slot), the select to the VPU.
    # TODO(synk): use jnp.expm1 for bit-exact torch.nn.ELU behaviour near 0^-
    # (ULP-level difference only) once its Mosaic lowering is confirmed.
    a = jnp.where(h > 0.0, h, jnp.exp(jnp.minimum(h, 0.0)) - 1.0)

    y = jnp.dot(a.astype(w2.dtype), w2,
                preferred_element_type=jnp.float32) + b2_ref[...]
    out_ref[...] = y.astype(out_ref.dtype)


def environment_condition_forward(env, params, *, batch_tile=DEFAULT_BATCH_TILE):
    """env: (B, D) float32.  params: dict of (in, out)-layout weights (f32 or bf16)."""
    B, D = env.shape
    out_dim = params["w2"].shape[1]

    # Tiny-batch fast path folds into the same code: a single full-array block
    # (block dims equal to the array dims satisfy the (8,128) rule).  Large
    # batches use 512-row tiles; a non-divisible tail block's OOB rows are
    # simply discarded on writeback -- no input pad, no output slice.
    tile_b = batch_tile if B > batch_tile else B
    grid = (pl.cdiv(B, tile_b),)

    cost = pl.CostEstimate(
        flops=2 * B * (D * out_dim + out_dim * out_dim),
        transcendentals=B * out_dim,
        bytes_accessed=(env.size * env.dtype.itemsize
                        + sum(int(p.size) * p.dtype.itemsize for p in params.values())
                        + B * out_dim * 4),
    )

    return pl.pallas_call(
        environment_condition_kernel,
        out_shape=jax.ShapeDtypeStruct((B, out_dim), jnp.float32),
        grid_spec=pltpu.PrefetchScalarGridSpec(
            num_scalar_prefetch=0,
            grid=grid,
            in_specs=[
                pl.BlockSpec((tile_b, D), lambda i: (i, 0)),         # x: tiled over batch
                pl.BlockSpec((D, out_dim), lambda i: (0, 0)),        # W1: VMEM-resident
                pl.BlockSpec((1, out_dim), lambda i: (0, 0)),        # b1
                pl.BlockSpec((out_dim, out_dim), lambda i: (0, 0)),  # W2
                pl.BlockSpec((1, out_dim), lambda i: (0, 0)),        # b2
            ],
            out_specs=pl.BlockSpec((tile_b, out_dim), lambda i: (i, 0)),
        ),
        compiler_params=pltpu.CompilerParams(
            dimension_semantics=("parallel",),
            vmem_limit_bytes=32 * 1024 * 1024,
        ),
        cost_estimate=cost,
    )(env, params["w1"], params["b1"], params["w2"], params["b2"])


def init_params(key, in_features, output_dim, *, weight_dtype=jnp.float32):
    """PyTorch nn.Linear-style uniform init; weights stored ONCE in (in, out)
    layout (so the kernel computes x @ W + b directly) and optionally in bf16
    (recommended MXU operand dtype on v6e/v7x).  Biases stay f32 and are added
    after the f32 accumulation.  All layout work happens here, not per call."""
    def linear(k, fan_in, fan_out):
        kw, kb = jax.random.split(k)
        bound = 1.0 / jnp.sqrt(jnp.float32(fan_in))
        w = jax.random.uniform(kw, (fan_in, fan_out), jnp.float32, -bound, bound)
        b = jax.random.uniform(kb, (1, fan_out), jnp.float32, -bound, bound)
        return w.astype(weight_dtype), b

    k1, k2 = jax.random.split(key)
    w1, b1 = linear(k1, in_features, output_dim)   # env_input_layer (lazily built in torch)
    w2, b2 = linear(k2, output_dim, output_dim)    # output_layer
    return {"w1": w1, "b1": b1, "w2": w2, "b2": b2}


def reference_forward(env, params):
    """Pure-JAX f32 reference matching the PyTorch module."""
    w1 = params["w1"].astype(jnp.float32)
    w2 = params["w2"].astype(jnp.float32)
    h = env @ w1 + params["b1"]
    a = jnp.where(h > 0.0, h, jnp.exp(jnp.minimum(h, 0.0)) - 1.0)   # ELU(alpha=1)
    return a @ w2 + params["b2"]


if __name__ == "__main__":
    key = jax.random.PRNGKey(0)
    k1, k2, k3 = jax.random.split(key, 3)

    # Module-consistent small case: batch=2, env features=16, output_dim=12.
    B, D, OUT = 2, 16, 12
    env_small = jax.random.normal(k1, (B, D), jnp.float32)
    params_f32 = init_params(k2, D, OUT)

    out_small = jax.block_until_ready(environment_condition_forward(env_small, params_f32))
    ref_small = reference_forward(env_small, params_f32)
    assert out_small.shape == (B, OUT)
    assert jnp.allclose(out_small, ref_small, atol=1e-5, rtol=1e-5)

    # Larger, non-divisible batch: exercises the tiled grid (2 steps -> both
    # v7x TensorCores get work) and the discarded-OOB-rows tail block.
    B_big = 1000
    env_big = jax.random.normal(k3, (B_big, D), jnp.float32)
    out_big = jax.block_until_ready(environment_condition_forward(env_big, params_f32))
    ref_big = reference_forward(env_big, params_f32)
    assert out_big.shape == (B_big, OUT)
    assert jnp.allclose(out_big, ref_big, atol=1e-4, rtol=1e-4)

    # bf16 weight path (v6e/v7x MXU operand dtype), f32 accumulation.
    params_bf16 = init_params(k2, D, OUT, weight_dtype=jnp.bfloat16)
    out_bf16 = jax.block_until_ready(environment_condition_forward(env_big, params_bf16))
    assert out_bf16.shape == (B_big, OUT)
    assert jnp.allclose(out_bf16, ref_big, atol=5e-2, rtol=5e-2)

    print("KERNEL_OK")
</pallas_src>

<mosaic_0001>
module attributes {stable_mosaic.version = 11 : i64} {
  func.func @environment_condition_kernel(%arg0: i32, %arg1: memref<2x16xf32, #tpu.memory_space<vmem>>, %arg2: memref<16x12xf32, #tpu.memory_space<vmem>>, %arg3: memref<1x12xf32, #tpu.memory_space<vmem>>, %arg4: memref<12x12xf32, #tpu.memory_space<vmem>>, %arg5: memref<1x12xf32, #tpu.memory_space<vmem>>, %arg6: memref<2x12xf32, #tpu.memory_space<vmem>>) attributes {dimension_semantics = [#tpu.dimension_semantics<parallel>], iteration_bounds = array<i64: 1>, scalar_prefetch = 0 : i64, scratch_operands = 0 : i64, tpu.core_type = #tpu.core_type<tc>, window_params = [{transform_indices = @transform_0, window_bounds = array<i64: 2, 16>}, {pipeline_mode = #tpu.pipeline_mode<synchronous>, transform_indices = @transform_1, window_bounds = array<i64: 16, 12>}, {pipeline_mode = #tpu.pipeline_mode<synchronous>, transform_indices = @transform_2, window_bounds = array<i64: 1, 12>}, {pipeline_mode = #tpu.pipeline_mode<synchronous>, transform_indices = @transform_3, window_bounds = array<i64: 12, 12>}, {pipeline_mode = #tpu.pipeline_mode<synchronous>, transform_indices = @transform_4, window_bounds = array<i64: 1, 12>}, {transform_indices = @transform_5, window_bounds = array<i64: 2, 12>}]} {
    %c0 = arith.constant 0 : index
    %c0_0 = arith.constant 0 : index
    %0 = vector.load %arg2[%c0, %c0_0] : memref<16x12xf32, #tpu.memory_space<vmem>>, vector<16x12xf32>
    %c0_1 = arith.constant 0 : index
    %c0_2 = arith.constant 0 : index
    %1 = vector.load %arg4[%c0_1, %c0_2] : memref<12x12xf32, #tpu.memory_space<vmem>>, vector<12x12xf32>
    %c0_3 = arith.constant 0 : index
    %c0_4 = arith.constant 0 : index
    %2 = vector.load %arg1[%c0_3, %c0_4] : memref<2x16xf32, #tpu.memory_space<vmem>>, vector<2x16xf32>
    %cst = arith.constant dense<0.000000e+00> : vector<2x12xf32>
    %3 = tpu.matmul %2, %0, %cst {dimension_numbers = #tpu.dot_dimension_numbers<[1], [0], [0], [1], [0, 0, 1, 1], [], []>} : vector<2x16xf32>, vector<16x12xf32>, vector<2x12xf32> -> vector<2x12xf32>
    %c0_5 = arith.constant 0 : index
    %c0_6 = arith.constant 0 : index
    %4 = vector.load %arg3[%c0_5, %c0_6] : memref<1x12xf32, #tpu.memory_space<vmem>>, vector<1x12xf32>
    %5 = vector.broadcast %4 : vector<1x12xf32> to vector<2x12xf32>
    %6 = arith.addf %3, %5 : vector<2x12xf32>
    %cst_7 = arith.constant 0.000000e+00 : f32
    %7 = vector.broadcast %cst_7 : f32 to vector<2x12xf32>
    %8 = arith.cmpf ogt, %6, %7 : vector<2x12xf32>
    %cst_8 = arith.constant 0.000000e+00 : f32
    %9 = vector.broadcast %cst_8 : f32 to vector<2x12xf32>
    %10 = arith.minimumf %6, %9 : vector<2x12xf32>
    %11 = math.exp %10 : vector<2x12xf32>
    %cst_9 = arith.constant 1.000000e+00 : f32
    %12 = vector.broadcast %cst_9 : f32 to vector<2x12xf32>
    %13 = arith.subf %11, %12 : vector<2x12xf32>
    %14 = arith.select %8, %6, %13 : vector<2x12xi1>, vector<2x12xf32>
    %cst_10 = arith.constant dense<0.000000e+00> : vector<2x12xf32>
    %15 = tpu.matmul %14, %1, %cst_10 {dimension_numbers = #tpu.dot_dimension_numbers<[1], [0], [0], [1], [0, 0, 1, 1], [], []>} : vector<2x12xf32>, vector<12x12xf32>, vector<2x12xf32> -> vector<2x12xf32>
    %c0_11 = arith.constant 0 : index
    %c0_12 = arith.constant 0 : index
    %16 = vector.load %arg5[%c0_11, %c0_12] : memref<1x12xf32, #tpu.memory_space<vmem>>, vector<1x12xf32>
    %17 = vector.broadcast %16 : vector<1x12xf32> to vector<2x12xf32>
    %18 = arith.addf %15, %17 : vector<2x12xf32>
    %c0_13 = arith.constant 0 : index
    %c0_14 = arith.constant 0 : index
    %19 = vector.load %arg6[%c0_13, %c0_14] : memref<2x12xf32, #tpu.memory_space<vmem>>, vector<2x12xf32>
    tpu.vector_store %arg6[%c0_13, %c0_14], %18 {strides = array<i32>} : memref<2x12xf32, #tpu.memory_space<vmem>>, vector<2x12xf32>,
    return
  }
  func.func @transform_0(%arg0: i32) -> (i32, i32) {
    %c0_i32 = arith.constant 0 : i32
    %c0_i32_0 = arith.constant 0 : i32
    return %arg0, %c0_i32 : i32, i32
  }
  func.func @transform_1(%arg0: i32) -> (i32, i32) {
    %c0_i32 = arith.constant 0 : i32
    %c0_i32_0 = arith.constant 0 : i32
    %c0_i32_1 = arith.constant 0 : i32
    return %c0_i32, %c0_i32_0 : i32, i32
  }
  func.func @transform_2(%arg0: i32) -> (i32, i32) {
    %c0_i32 = arith.constant 0 : i32
    %c0_i32_0 = arith.constant 0 : i32
    %c0_i32_1 = arith.constant 0 : i32
    return %c0_i32, %c0_i32_0 : i32, i32
  }
  func.func @transform_3(%arg0: i32) -> (i32, i32) {
    %c0_i32 = arith.constant 0 : i32
    %c0_i32_0 = arith.constant 0 : i32
    %c0_i32_1 = arith.constant 0 : i32
    return %c0_i32, %c0_i32_0 : i32, i32
  }
  func.func @transform_4(%arg0: i32) -> (i32, i32) {
    %c0_i32 = arith.constant 0 : i32
    %c0_i32_0 = arith.constant 0 : i32
    %c0_i32_1 = arith.constant 0 : i32
    return %c0_i32, %c0_i32_0 : i32, i32
  }
  func.func @transform_5(%arg0: i32) -> (i32, i32) {
    %c0_i32 = arith.constant 0 : i32
    %c0_i32_0 = arith.constant 0 : i32
    return %arg0, %c0_i32 : i32, i32
  }
}

</mosaic_0001>

<llo_original>
// kernel: tpu_custom_call.1
$region0: #{tpu_custom_call.1}
  #allocation0 [shape = 'u32[]', space=smem, size = 0x4, offset = 0x4, fixed_abs, tag = 'smem constant byte address 0x4 - core index']
  #allocation1 [shape = 'u32[144,128]{1,0:T(1,128)}', space=vmem, size = 0x12000, scoped, tag = 'internal scratch']
  %s0 = inlined_call_operand.hbm [shape: f32[2,16], index: 0, kind: input, shape index: {}]
  %s1 = inlined_call_operand.hbm [shape: f32[16,12], index: 1, kind: input, shape index: {}]
  %s2 = inlined_call_operand.vmem [shape: f32[1,12], index: 2, kind: input, shape index: {}]
  %s3 = inlined_call_operand.hbm [shape: f32[12,12], index: 3, kind: input, shape index: {}]
  %s4 = inlined_call_operand.vmem [shape: f32[1,12], index: 4, kind: input, shape index: {}]
  %s5 = inlined_call_operand.hbm [shape: f32[2,12], index: 5, kind: output, shape index: {}]
  %s6 = sld [smem:[#allocation0]]
  $region42: #{tpu_custom_call.1} parent=0
    _
  %s8 = ssub.s32 1, %s6
  %s9 = scalar_select 0, %s8, %s6
  $region1: #{tpu_custom_call.1} parent=0
    #allocation2 [shape = 'u8[1024]{0}', space=vmem, size = 0x400, scoped, tag = 'input window, operand 0, single buffered']
    #allocation3 [shape = 's32[1]{0}', space=sflag, size = 0x4, scoped, tag = 'scoped memory for tpu_custom_call.1']
    #allocation4 [shape = 's32[1]{0}', space=sflag, size = 0x4, scoped, tag = 'scoped memory for tpu_custom_call.1']
    #allocation5 [shape = 'u8[8192]{0}', space=vmem, size = 0x2000, scoped, tag = 'input window, operand 1, single buffered']
    #allocation6 [shape = 's32[1]{0}', space=sflag, size = 0x4, scoped, tag = 'scoped memory for tpu_custom_call.1']
    #allocation7 [shape = 'u8[8192]{0}', space=vmem, size = 0x2000, scoped, tag = 'input window, operand 3, single buffered']
    #allocation8 [shape = 'u8[1024]{0}', space=vmem, size = 0x400, scoped, tag = 'output window, operand 0, single buffered']
    %10 = vsyncpa [#allocation3], 0
    %11 = vsyncpa [#allocation6], 0
    %12 = vsyncpa [#allocation4], 0
    // Predicated region
    $region2: #{tpu_custom_call.1} parent=1 // pred_check
      _
    $region3: #{tpu_custom_call.1} parent=1 // pred_check_branch
      %14 = sbr.rel (0) target = $region5
    $region4: #{tpu_custom_call.1} parent=1 // pred_region
      %s16 = ssub.s32 32, 32
      %17 = vsyncadd [#allocation3], %s16
      %s19 = sshll.u32 [#allocation2], 4
      %s20 = int_to_ptr.vmem [resolvable:$true] %s19
      %22 = dma.hbm_to_vmem [thread:$0]  %s0, 32, %s20, [#allocation3]
    $region5: #{tpu_custom_call.1} parent=1 // pred_fallthru
      _
    // Predicated region
    $region6: #{tpu_custom_call.1} parent=1 // pred_check
      _
    $region7: #{tpu_custom_call.1} parent=1 // pred_check_branch
      %24 = sbr.rel (0) target = $region9
    $region8: #{tpu_custom_call.1} parent=1 // pred_region
      %s26 = ssub.s32 256, 256
      %27 = vsyncadd [#allocation6], %s26
      %s28 = sshll.u32 [#allocation5], 4
      %s29 = int_to_ptr.vmem [resolvable:$true] %s28
      %34 = dma.hbm_to_vmem [thread:$0]  %s1, 256, %s29, [#allocation6], 128, 128, 8
    $region9: #{tpu_custom_call.1} parent=1 // pred_fallthru
      _
    // Predicated region
    $region10: #{tpu_custom_call.1} parent=1 // pred_check
      _
    $region11: #{tpu_custom_call.1} parent=1 // pred_check_branch
      %36 = sbr.rel (0) target = $region13
    $region12: #{tpu_custom_call.1} parent=1 // pred_region
      _
    $region13: #{tpu_custom_call.1} parent=1 // pred_fallthru
      _
    // Predicated region
    $region14: #{tpu_custom_call.1} parent=1 // pred_check
      _
    $region15: #{tpu_custom_call.1} parent=1 // pred_check_branch
      %38 = sbr.rel (0) target = $region17
    $region16: #{tpu_custom_call.1} parent=1 // pred_region
      %s40 = ssub.s32 256, 256
      %41 = vsyncadd [#allocation6], %s40
      %s42 = sshll.u32 [#allocation7], 4
      %s43 = int_to_ptr.vmem [resolvable:$true] %s42
      %48 = dma.hbm_to_vmem [thread:$0]  %s3, 256, %s43, [#allocation6], 128, 128, 8
    $region17: #{tpu_custom_call.1} parent=1 // pred_fallthru
      _
    // Predicated region
    $region18: #{tpu_custom_call.1} parent=1 // pred_check
      _
    $region19: #{tpu_custom_call.1} parent=1 // pred_check_branch
      %50 = sbr.rel (0) target = $region21
    $region20: #{tpu_custom_call.1} parent=1 // pred_region
      _
    $region21: #{tpu_custom_call.1} parent=1 // pred_fallthru
      _
    // Predicated region
    $region22: #{tpu_custom_call.1} parent=1 // pred_check
      _
    $region23: #{tpu_custom_call.1} parent=1 // pred_check_branch
      %52 = sbr.rel (0) target = $region25
    $region24: #{tpu_custom_call.1} parent=1 // pred_region
      %53 = dma.done [#allocation3], 32
    $region25: #{tpu_custom_call.1} parent=1 // pred_fallthru
      _
    // Predicated region
    $region26: #{tpu_custom_call.1} parent=1 // pred_check
      _
    $region27: #{tpu_custom_call.1} parent=1 // pred_check_branch
      %55 = sbr.rel (0) target = $region29
    $region28: #{tpu_custom_call.1} parent=1 // pred_region
      %56 = dma.done [#allocation6], 256
    $region29: #{tpu_custom_call.1} parent=1 // pred_fallthru
      _
    // Predicated region
    $region30: #{tpu_custom_call.1} parent=1 // pred_check
      _
    $region31: #{tpu_custom_call.1} parent=1 // pred_check_branch
      %58 = sbr.rel (0) target = $region33
    $region32: #{tpu_custom_call.1} parent=1 // pred_region
      %59 = dma.done [#allocation6], 256
    $region33: #{tpu_custom_call.1} parent=1 // pred_fallthru
      _
    %v60 = vld [vmem:[#allocation5] sm:$0xff]
    %v61 = vld [vmem:[#allocation5 + $0x8] sm:$0xff]
    %v62 = vld [vmem:[#allocation7] sm:$0xff]
    %v63 = vld [vmem:[#allocation7 + $0x8] sm:$0xf]
    %v64 = vld [vmem:[#allocation2] sm:$0x3]
    %v65 = vld [vmem:[%s2] sm:$0x1]
    %v67 = vlaneseq
    %v68 = vshrl.u32 %v67, 7
    %v69 = vsub.s32 0, %v68
    %v70 = vrot.slane %v65, %v69
    %vm72 = vcmask 130048
    %v74 = vsel %vm72, %v64, 0
    %76 = vmatprep.subr.mxu0 0.0
    %77 = vmatpush1.msra.mxu0 0.0
    %78 = vmatprep.subr.mxu0 0.0
    %79 = vmatpush1.msra.mxu0 0.0
    %80 = vmatprep.subr.mxu0 0.0
    %81 = vmatpush1.msra.mxu0 0.0
    %82 = vmatprep.subr.mxu0 0.0
    %83 = vmatpush1.msra.mxu0 0.0
    %84 = vmatprep.subr.mxu0 0.0
    %85 = vmatpush1.msra.mxu0 0.0
    %86 = vmatprep.subr.mxu0 0.0
    %87 = vmatpush1.msra.mxu0 0.0
    %88 = vmatprep.subr.mxu0 0.0
    %89 = vmatpush1.msra.mxu0 0.0
    %90 = vmatprep.subr.mxu0 0.0
    %91 = vmatpush1.msra.mxu0 0.0
    %92 = vmatprep.subr.mxu0 0.0
    %93 = vmatpush1.msra.mxu0 0.0
    %94 = vmatprep.subr.mxu0 0.0
    %95 = vmatpush1.msra.mxu0 0.0
    %96 = vmatprep.subr.mxu0 0.0
    %97 = vmatpush1.msra.mxu0 0.0
    %98 = vmatprep.subr.mxu0 0.0
    %99 = vmatpush1.msra.mxu0 0.0
    %100 = vmatprep.subr.mxu0 0.0
    %101 = vmatpush1.msra.mxu0 0.0
    %102 = vmatprep.subr.mxu0 0.0
    %103 = vmatpush1.msra.mxu0 0.0
    %104 = vmatprep.subr.mxu0 0.0
    %105 = vmatpush1.msra.mxu0 %v61
    %106 = vmatprep.subr.mxu0 0.0
    %107 = vmatpush1.msra.mxu0 %v60
    %108 = vmatprep.subr.mxu0 0.0
    %109 = vmatpush2.msra.mxu0 0.0
    %110 = vmatprep.subr.mxu0 0.0
    %111 = vmatpush2.msra.mxu0 0.0
    %112 = vmatprep.subr.mxu0 0.0
    %113 = vmatpush2.msra.mxu0 0.0
    %114 = vmatprep.subr.mxu0 0.0
    %115 = vmatpush2.msra.mxu0 0.0
    %116 = vmatprep.subr.mxu0 0.0
    %117 = vmatpush2.msra.mxu0 0.0
    %118 = vmatprep.subr.mxu0 0.0
    %119 = vmatpush2.msra.mxu0 0.0
    %120 = vmatprep.subr.mxu0 0.0
    %121 = vmatpush2.msra.mxu0 0.0
    %122 = vmatprep.subr.mxu0 0.0
    %123 = vmatpush2.msra.mxu0 0.0
    %124 = vmatprep.subr.mxu0 0.0
    %125 = vmatpush2.msra.mxu0 0.0
    %126 = vmatprep.subr.mxu0 0.0
    %127 = vmatpush2.msra.mxu0 0.0
    %128 = vmatprep.subr.mxu0 0.0
    %129 = vmatpush2.msra.mxu0 0.0
    %130 = vmatprep.subr.mxu0 0.0
    %131 = vmatpush2.msra.mxu0 0.0
    %132 = vmatprep.subr.mxu0 0.0
    %133 = vmatpush2.msra.mxu0 0.0
    %134 = vmatprep.subr.mxu0 0.0
    %135 = vmatpush2.msra.mxu0 0.0
    %136 = vmatprep.subr.mxu0 0.0
    %137 = vmatpush2.msra.mxu0 0.0
    %138 = vmatprep.subr.mxu0 0.0
    %139 = vmatpush2.msra.mxu0 0.0
    %140 = vmatprep.mubr.f32.mxu0 0.0
    %141 = vmatmul.mubr.f32.gmra.mxu0 %v74
    %v142 = vpop.f32.mrf.mxu0
    %v143 = vadd.f32 %v70, %v142
    %v144 = vpop.f32.mrf.mxu0
    %145 = vdwg.mxu0
    %vm146 = vcmp.gt.f32.partialorder %v143, 0.0
    %v147 = vmin.f32 %v143, 0.0
    %v148 = vmul.f32 %v147, 1.442695
    %v149 = vpow.pop %v148
    %v150 = vsub.f32 %v149, 1.0
    %v151 = vsel %vm146, %v143, %v150
    %v152 = vld [vmem:[%s4] sm:$0x1]
    %v154 = vlaneseq
    %v155 = vshrl.u32 %v154, 7
    %v156 = vsub.s32 0, %v155
    %v157 = vrot.slane %v152, %v156
    %vm159 = vcmask 97280
    %v161 = vsel %vm159, %v151, 0
    %vm163 = vcmask 1043456
    %v165 = vsel %vm163, %v63, 0
    %167 = vmatprep.subr.mxu0 0.0
    %168 = vmatpush1.msra.mxu0 0.0
    %169 = vmatprep.subr.mxu0 0.0
    %170 = vmatpush1.msra.mxu0 0.0
    %171 = vmatprep.subr.mxu0 0.0
    %172 = vmatpush1.msra.mxu0 0.0
    %173 = vmatprep.subr.mxu0 0.0
    %174 = vmatpush1.msra.mxu0 0.0
    %175 = vmatprep.subr.mxu0 0.0
    %176 = vmatpush1.msra.mxu0 0.0
    %177 = vmatprep.subr.mxu0 0.0
    %178 = vmatpush1.msra.mxu0 0.0
    %179 = vmatprep.subr.mxu0 0.0
    %180 = vmatpush1.msra.mxu0 0.0
    %181 = vmatprep.subr.mxu0 0.0
    %182 = vmatpush1.msra.mxu0 0.0
    %183 = vmatprep.subr.mxu0 0.0
    %184 = vmatpush1.msra.mxu0 0.0
    %185 = vmatprep.subr.mxu0 0.0
    %186 = vmatpush1.msra.mxu0 0.0
    %187 = vmatprep.subr.mxu0 0.0
    %188 = vmatpush1.msra.mxu0 0.0
    %189 = vmatprep.subr.mxu0 0.0
    %190 = vmatpush1.msra.mxu0 0.0
    %191 = vmatprep.subr.mxu0 0.0
    %192 = vmatpush1.msra.mxu0 0.0
    %193 = vmatprep.subr.mxu0 0.0
    %194 = vmatpush1.msra.mxu0 0.0
    %195 = vmatprep.subr.mxu0 0.0
    %196 = vmatpush1.msra.mxu0 %v165
    %197 = vmatprep.subr.mxu0 0.0
    %198 = vmatpush1.msra.mxu0 %v62
    %199 = vmatprep.subr.mxu0 0.0
    %200 = vmatpush2.msra.mxu0 0.0
    %201 = vmatprep.subr.mxu0 0.0
    %202 = vmatpush2.msra.mxu0 0.0
    %203 = vmatprep.subr.mxu0 0.0
    %204 = vmatpush2.msra.mxu0 0.0
    %205 = vmatprep.subr.mxu0 0.0
    %206 = vmatpush2.msra.mxu0 0.0
    %207 = vmatprep.subr.mxu0 0.0
    %208 = vmatpush2.msra.mxu0 0.0
    %209 = vmatprep.subr.mxu0 0.0
    %210 = vmatpush2.msra.mxu0 0.0
    %211 = vmatprep.subr.mxu0 0.0
    %212 = vmatpush2.msra.mxu0 0.0
    %213 = vmatprep.subr.mxu0 0.0
    %214 = vmatpush2.msra.mxu0 0.0
    %215 = vmatprep.subr.mxu0 0.0
    %216 = vmatpush2.msra.mxu0 0.0
    %217 = vmatprep.subr.mxu0 0.0
    %218 = vmatpush2.msra.mxu0 0.0
    %219 = vmatprep.subr.mxu0 0.0
    %220 = vmatpush2.msra.mxu0 0.0
    %221 = vmatprep.subr.mxu0 0.0
    %222 = vmatpush2.msra.mxu0 0.0
    %223 = vmatprep.subr.mxu0 0.0
    %224 = vmatpush2.msra.mxu0 0.0
    %225 = vmatprep.subr.mxu0 0.0
    %226 = vmatpush2.msra.mxu0 0.0
    %227 = vmatprep.subr.mxu0 0.0
    %228 = vmatpush2.msra.mxu0 0.0
    %229 = vmatprep.subr.mxu0 0.0
    %230 = vmatpush2.msra.mxu0 0.0
    %231 = vmatprep.mubr.f32.mxu0 0.0
    %232 = vmatmul.mubr.f32.gmra.mxu0 %v161
    %v233 = vpop.f32.mrf.mxu0
    %v234 = vadd.f32 %v157, %v233
    %v235 = vpop.f32.mrf.mxu0
    %236 = vdwg.mxu0
    %vm237 = vcmask 91136
    %238 = vst.msk [vmem:[#allocation8] sm:$0x3] %vm237, %v234
    // Predicated region
    $region34: #{tpu_custom_call.1} parent=1 // pred_check
      _
    $region35: #{tpu_custom_call.1} parent=1 // pred_check_branch
      %240 = sbr.rel (0) target = $region37
    $region36: #{tpu_custom_call.1} parent=1 // pred_region
      %s242 = ssub.s32 32, 32
      %243 = vsyncadd [#allocation4], %s242
      %s245 = sshll.u32 [#allocation8], 4
      %s246 = int_to_ptr.vmem [resolvable:$true] %s245
      %248 = dma.vmem_to_hbm [thread:$0]  %s246, 32, %s5, [#allocation4]
    $region37: #{tpu_custom_call.1} parent=1 // pred_fallthru
      _
    // Predicated region
    $region38: #{tpu_custom_call.1} parent=1 // pred_check
      _
    $region39: #{tpu_custom_call.1} parent=1 // pred_check_branch
      %250 = sbr.rel (0) target = $region41
    $region40: #{tpu_custom_call.1} parent=1 // pred_region
      %251 = dma.done [#allocation4], 32
    $region41: #{tpu_custom_call.1} parent=1 // pred_fallthru
      _
    %252 = vsyncpa [#allocation3], 1
    %253 = vsyncpa [#allocation6], 1
    %254 = vsyncpa [#allocation4], 1

</llo_original>
